<compile_context>
chip_gen: v7x
topology: tpu7x:2x2x1
jax: 0.10.0
libtpu: 0.0.40
codegen_flags: <defaults>
</compile_context>

<pallas_src>
import functools

import jax
import jax.numpy as jnp
from jax import lax
from jax.experimental import pallas as pl
from jax.experimental.pallas import tpu as pltpu

ALPHA = 0.5
GAMMA = 2.0
NUM_PARTIALS = 2            # outer "parallel" grid axis (both TCs on v7x; no-op cost on 1-TC chips)
_OUT_SUB, _OUT_LANE = 8, 128  # per-partial output tile, kept (8,128)-aligned


def _round_up(x, m):
    return ((x + m - 1) // m) * m


def _focal_loss_kernel(pred_ref, target_ref, out_ref, acc_ref, *,
                       alpha, gamma, n_total, block_rows):
    p = pl.program_id(0)          # partial-sum slot (parallel axis)
    s = pl.program_id(1)          # batch-tile step (arbitrary / reduction axis)
    n_steps = pl.num_programs(1)

    @pl.when(s == 0)
    def _init():
        acc_ref[...] = jnp.zeros_like(acc_ref)

    logits = pred_ref[...].astype(jnp.float32)                   # [bm, C]
    bm, c = logits.shape

    # Numerically stable log-softmax pieces along the class (lane) axis.
    row_max = jnp.max(logits, axis=1, keepdims=True)             # [bm, 1]
    shifted = logits - row_max                                    # [bm, C]
    exp_shifted = jnp.exp(shifted)                                # [bm, C]
    sum_exp = jnp.sum(exp_shifted, axis=1, keepdims=True)         # [bm, 1]

    # One-hot gather of the target class (broadcasted iota + compare + reduce).
    tgt = target_ref[...]                                         # [bm, 1] int32
    col_ids = lax.broadcasted_iota(jnp.int32, (bm, c), 1)         # [bm, C]
    onehot = (col_ids == tgt).astype(jnp.float32)                 # [bm, C]
    shifted_t = jnp.sum(shifted * onehot, axis=1, keepdims=True)  # [bm, 1]
    exp_t = jnp.sum(exp_shifted * onehot, axis=1, keepdims=True)  # [bm, 1]

    logpt = jnp.minimum(shifted_t - jnp.log(sum_exp), 0.0)        # [bm, 1], clamp <= 0
    ce = -logpt                                                   # nll_loss(reduction='none')
    pt = exp_t / sum_exp                                          # == exp(logpt), reuses exp(shifted)
    one_minus_pt = jnp.maximum(1.0 - pt, 0.0)
    if gamma == 2.0:
        mod = one_minus_pt * one_minus_pt                         # VPU multiply, not lax.pow
    elif gamma == 1.0:
        mod = one_minus_pt
    elif gamma == 0.0:
        mod = jnp.ones_like(one_minus_pt)
    else:
        mod = one_minus_pt ** gamma
    focal = alpha * mod * ce                                      # [bm, 1]

    # Mask rows that are padding beyond the true batch size.
    row0 = (p * n_steps + s) * block_rows
    row_ids = row0 + lax.broadcasted_iota(jnp.int32, (bm, 1), 0)
    valid = (row_ids < n_total).astype(jnp.float32)

    acc_ref[...] += jnp.sum(focal * valid)                        # raw partial sum (no per-block mean)

    @pl.when(s == n_steps - 1)
    def _finalize():
        out_ref[...] = jnp.broadcast_to(acc_ref[...], out_ref.shape)


def focal_loss(pred, target, alpha=ALPHA, gamma=GAMMA, block_rows=1024,
               num_partials=NUM_PARTIALS):
    """Pallas-backed FocalLoss forward with reduction='mean'."""
    n, c = pred.shape
    itemsize = jnp.dtype(pred.dtype).itemsize
    target2d = target.reshape(n, 1).astype(jnp.int32)

    # Row-tile size: double-buffered pred tile + lane-padded (128) int32 target tile must
    # fit a conservative VMEM budget (valid on v7x's smaller VMEM as well).
    budget = 8 * 1024 * 1024
    per_row = 2 * (c * itemsize + 128 * 4)
    bm = min(block_rows, max(8, budget // per_row))
    bm = max(8, (bm // 8) * 8)
    bm = min(bm, _round_up(n, 8))

    total_blocks = pl.cdiv(n, bm)
    steps = pl.cdiv(total_blocks, num_partials)
    n_pad = num_partials * steps * bm
    if n_pad != n:
        pred = jnp.pad(pred, ((0, n_pad - n), (0, 0)))
        target2d = jnp.pad(target2d, ((0, n_pad - n), (0, 0)))

    tile_bytes = bm * c * itemsize + bm * 128 * 4
    vmem_limit = int(min(64 * 1024 * 1024,
                         max(16 * 1024 * 1024, 4 * tile_bytes + (2 << 20))))

    kernel = functools.partial(_focal_loss_kernel, alpha=float(alpha),
                               gamma=float(gamma), n_total=n, block_rows=bm)

    out = pl.pallas_call(
        kernel,
        out_shape=jax.ShapeDtypeStruct((num_partials * _OUT_SUB, _OUT_LANE), jnp.float32),
        grid_spec=pltpu.PrefetchScalarGridSpec(
            num_scalar_prefetch=0,
            grid=(num_partials, steps),
            in_specs=[
                pl.BlockSpec((bm, c), lambda p, s: (p * steps + s, 0)),
                pl.BlockSpec((bm, 1), lambda p, s: (p * steps + s, 0)),
            ],
            out_specs=pl.BlockSpec((_OUT_SUB, _OUT_LANE), lambda p, s: (p, 0)),
            scratch_shapes=[pltpu.VMEM((1, 1), jnp.float32)],
        ),
        compiler_params=pltpu.CompilerParams(
            dimension_semantics=("parallel", "arbitrary"),
            vmem_limit_bytes=vmem_limit,
        ),
    )(pred, target2d)

    partials = out[0::_OUT_SUB, 0]                     # one partial sum per parallel slice
    return jnp.sum(partials) / jnp.float32(n)          # global-mean reduction


def focal_loss_ref(pred, target, alpha=ALPHA, gamma=GAMMA):
    """Pure-JAX reference mirroring the PyTorch module (reduction='mean')."""
    logpt_full = jax.nn.log_softmax(pred.astype(jnp.float32), axis=1)
    logpt = jnp.take_along_axis(logpt_full, target[:, None].astype(jnp.int32), axis=1)[:, 0]
    ce = -logpt
    pt = jnp.exp(-ce)
    focal = alpha * (1.0 - pt) ** gamma * ce
    return jnp.mean(focal)


if __name__ == "__main__":
    key = jax.random.PRNGKey(0)
    k_pred, k_tgt = jax.random.split(key)

    N, C = 8, 32  # small [batch, num_classes] demo; production sizing is N >= tens of thousands
    pred = jax.random.normal(k_pred, (N, C), dtype=jnp.float32)
    target = jax.random.randint(k_tgt, (N,), 0, C, dtype=jnp.int32)

    out = jax.block_until_ready(focal_loss(pred, target))
    ref = jax.block_until_ready(focal_loss_ref(pred, target))
    assert jnp.allclose(out, ref, rtol=1e-5, atol=1e-6), (out, ref)

    print("KERNEL_OK")
</pallas_src>

<mosaic_0001>
module attributes {stable_mosaic.version = 11 : i64} {
  func.func @_focal_loss_kernel(%arg0: i32, %arg1: i32, %arg2: memref<8x32xf32, #tpu.memory_space<vmem>>, %arg3: memref<8x1xi32, #tpu.memory_space<vmem>>, %arg4: memref<8x128xf32, #tpu.memory_space<vmem>>, %arg5: memref<1x1xf32, #tpu.memory_space<vmem>>) attributes {dimension_semantics = [#tpu.dimension_semantics<parallel>, #tpu.dimension_semantics<arbitrary>], iteration_bounds = array<i64: 2, 1>, scalar_prefetch = 0 : i64, scratch_operands = 1 : i64, tpu.core_type = #tpu.core_type<tc>, window_params = [{transform_indices = @transform_0, window_bounds = array<i64: 8, 32>}, {transform_indices = @transform_1, window_bounds = array<i64: 8, 1>}, {transform_indices = @transform_2, window_bounds = array<i64: 8, 128>}]} {
    %c0_i32 = arith.constant 0 : i32
    %0 = arith.cmpi eq, %arg1, %c0_i32 : i32
    %1 = arith.extui %0 : i1 to i32
    %c0_i32_0 = arith.constant 0 : i32
    %2 = arith.cmpi ne, %1, %c0_i32_0 : i32
    scf.if %2 {
      %cst_20 = arith.constant 0.000000e+00 : f32
      %60 = vector.broadcast %cst_20 : f32 to vector<1x1xf32>
      %c0_21 = arith.constant 0 : index
      %c0_22 = arith.constant 0 : index
      %61 = vector.load %arg5[%c0_21, %c0_22] : memref<1x1xf32, #tpu.memory_space<vmem>>, vector<1x1xf32>
      tpu.vector_store %arg5[%c0_21, %c0_22], %60 {strides = array<i32>} : memref<1x1xf32, #tpu.memory_space<vmem>>, vector<1x1xf32>,
    } else {
    }
    %c0 = arith.constant 0 : index
    %c0_1 = arith.constant 0 : index
    %3 = vector.load %arg2[%c0, %c0_1] : memref<8x32xf32, #tpu.memory_space<vmem>>, vector<8x32xf32>
    %cst = arith.constant dense<0xFF800000> : vector<8xf32>
    %4 = vector.multi_reduction <maximumf>, %3, %cst [1] : vector<8x32xf32> to vector<8xf32>
    %5 = vector.shape_cast %4 : vector<8xf32> to vector<8x1xf32>
    %6 = vector.broadcast %5 : vector<8x1xf32> to vector<8x32xf32>
    %7 = arith.subf %3, %6 : vector<8x32xf32>
    %8 = math.exp %7 : vector<8x32xf32>
    %cst_2 = arith.constant dense<0.000000e+00> : vector<8xf32>
    %9 = vector.multi_reduction <add>, %8, %cst_2 [1] : vector<8x32xf32> to vector<8xf32>
    %10 = vector.shape_cast %9 : vector<8xf32> to vector<8x1xf32>
    %c0_3 = arith.constant 0 : index
    %c0_4 = arith.constant 0 : index
    %11 = vector.load %arg3[%c0_3, %c0_4] : memref<8x1xi32, #tpu.memory_space<vmem>>, vector<8x1xi32>
    %12 = tpu.iota {dimensions = array<i32: 1>} : vector<8x32xi32>
    %13 = vector.broadcast %11 : vector<8x1xi32> to vector<8x32xi32>
    %14 = arith.cmpi eq, %12, %13 : vector<8x32xi32>
    %15 = arith.extui %14 : vector<8x32xi1> to vector<8x32xi32>
    %16 = arith.sitofp %15 : vector<8x32xi32> to vector<8x32xf32>
    %17 = arith.mulf %7, %16 : vector<8x32xf32>
    %cst_5 = arith.constant dense<0.000000e+00> : vector<8xf32>
    %18 = vector.multi_reduction <add>, %17, %cst_5 [1] : vector<8x32xf32> to vector<8xf32>
    %19 = vector.shape_cast %18 : vector<8xf32> to vector<8x1xf32>
    %20 = arith.mulf %8, %16 : vector<8x32xf32>
    %cst_6 = arith.constant dense<0.000000e+00> : vector<8xf32>
    %21 = vector.multi_reduction <add>, %20, %cst_6 [1] : vector<8x32xf32> to vector<8xf32>
    %22 = vector.shape_cast %21 : vector<8xf32> to vector<8x1xf32>
    %23 = math.log %10 : vector<8x1xf32>
    %24 = arith.subf %19, %23 : vector<8x1xf32>
    %cst_7 = arith.constant 0.000000e+00 : f32
    %25 = vector.broadcast %cst_7 : f32 to vector<8x1xf32>
    %26 = arith.minimumf %24, %25 : vector<8x1xf32>
    %cst_8 = arith.constant 0.000000e+00 : f32
    %27 = vector.broadcast %cst_8 : f32 to vector<8x1xf32>
    %28 = arith.subf %27, %26 : vector<8x1xf32>
    %29 = arith.divf %22, %10 : vector<8x1xf32>
    %cst_9 = arith.constant 1.000000e+00 : f32
    %30 = vector.broadcast %cst_9 : f32 to vector<8x1xf32>
    %31 = arith.subf %30, %29 : vector<8x1xf32>
    %cst_10 = arith.constant 0.000000e+00 : f32
    %32 = vector.broadcast %cst_10 : f32 to vector<8x1xf32>
    %33 = arith.maximumf %31, %32 : vector<8x1xf32>
    %34 = arith.mulf %33, %33 : vector<8x1xf32>
    %cst_11 = arith.constant 5.000000e-01 : f32
    %35 = vector.broadcast %cst_11 : f32 to vector<8x1xf32>
    %36 = arith.mulf %35, %34 : vector<8x1xf32>
    %37 = arith.mulf %36, %28 : vector<8x1xf32>
    %c1_i32 = arith.constant 1 : i32
    %38 = arith.muli %arg0, %c1_i32 : i32
    %39 = arith.addi %38, %arg1 : i32
    %c8_i32 = arith.constant 8 : i32
    %40 = arith.muli %39, %c8_i32 : i32
    %41 = tpu.iota {dimensions = array<i32: 0>} : vector<8x1xi32>
    %42 = vector.broadcast %40 : i32 to vector<8x1xi32>
    %43 = arith.addi %42, %41 : vector<8x1xi32>
    %c8_i32_12 = arith.constant 8 : i32
    %44 = vector.broadcast %c8_i32_12 : i32 to vector<8x1xi32>
    %45 = arith.cmpi slt, %43, %44 : vector<8x1xi32>
    %46 = arith.extui %45 : vector<8x1xi1> to vector<8x1xi32>
    %47 = arith.sitofp %46 : vector<8x1xi32> to vector<8x1xf32>
    %c0_13 = arith.constant 0 : index
    %c0_14 = arith.constant 0 : index
    %48 = vector.load %arg5[%c0_13, %c0_14] : memref<1x1xf32, #tpu.memory_space<vmem>>, vector<1x1xf32>
    %49 = arith.mulf %37, %47 : vector<8x1xf32>
    %50 = vector.shape_cast %49 : vector<8x1xf32> to vector<1x8x1xf32>
    %cst_15 = arith.constant dense<0.000000e+00> : vector<1xf32>
    %51 = vector.multi_reduction <add>, %50, %cst_15 [1, 2] : vector<1x8x1xf32> to vector<1xf32>
    %52 = vector.shape_cast %51 : vector<1xf32> to vector<1x1x1xf32>
    %53 = vector.extract %52[0, 0, 0] : f32 from vector<1x1x1xf32>
    %54 = vector.broadcast %53 : f32 to vector<1x1xf32>
    %55 = arith.addf %48, %54 : vector<1x1xf32>
    %c0_16 = arith.constant 0 : index
    %c0_17 = arith.constant 0 : index
    %56 = vector.load %arg5[%c0_16, %c0_17] : memref<1x1xf32, #tpu.memory_space<vmem>>, vector<1x1xf32>
    tpu.vector_store %arg5[%c0_16, %c0_17], %55 {strides = array<i32>} : memref<1x1xf32, #tpu.memory_space<vmem>>, vector<1x1xf32>,
    %c0_i32_18 = arith.constant 0 : i32
    %57 = arith.cmpi eq, %arg1, %c0_i32_18 : i32
    %58 = arith.extui %57 : i1 to i32
    %c0_i32_19 = arith.constant 0 : i32
    %59 = arith.cmpi ne, %58, %c0_i32_19 : i32
    scf.if %59 {
      %c0_20 = arith.constant 0 : index
      %c0_21 = arith.constant 0 : index
      %60 = vector.load %arg5[%c0_20, %c0_21] : memref<1x1xf32, #tpu.memory_space<vmem>>, vector<1x1xf32>
      %61 = vector.shape_cast %60 : vector<1x1xf32> to vector<1x1xf32>
      %62 = vector.broadcast %61 : vector<1x1xf32> to vector<8x128xf32>
      %c0_22 = arith.constant 0 : index
      %c0_23 = arith.constant 0 : index
      %63 = vector.load %arg4[%c0_22, %c0_23] : memref<8x128xf32, #tpu.memory_space<vmem>>, vector<8x128xf32>
      tpu.vector_store %arg4[%c0_22, %c0_23], %62 {strides = array<i32>} : memref<8x128xf32, #tpu.memory_space<vmem>>, vector<8x128xf32>,
    } else {
    }
    return
  }
  func.func @transform_0(%arg0: i32, %arg1: i32) -> (i32, i32) {
    %c1_i32 = arith.constant 1 : i32
    %0 = arith.muli %arg0, %c1_i32 : i32
    %1 = arith.addi %0, %arg1 : i32
    %c0_i32 = arith.constant 0 : i32
    %c0_i32_0 = arith.constant 0 : i32
    return %1, %c0_i32 : i32, i32
  }
  func.func @transform_1(%arg0: i32, %arg1: i32) -> (i32, i32) {
    %c1_i32 = arith.constant 1 : i32
    %0 = arith.muli %arg0, %c1_i32 : i32
    %1 = arith.addi %0, %arg1 : i32
    %c0_i32 = arith.constant 0 : i32
    %c0_i32_0 = arith.constant 0 : i32
    return %1, %c0_i32 : i32, i32
  }
  func.func @transform_2(%arg0: i32, %arg1: i32) -> (i32, i32) {
    %c0_i32 = arith.constant 0 : i32
    %c0_i32_0 = arith.constant 0 : i32
    return %arg0, %c0_i32 : i32, i32
  }
}

</mosaic_0001>

<llo_original>
// kernel: tpu_custom_call.1
$region0: #{tpu_custom_call.1}
  #allocation0 [shape = 'u32[]', space=smem, size = 0x4, offset = 0x4, fixed_abs, tag = 'smem constant byte address 0x4 - core index']
  #allocation1 [shape = 'u32[144,128]{1,0:T(1,128)}', space=vmem, size = 0x12000, scoped, tag = 'internal scratch']
  #allocation2 [shape = 'f32[1,1]{1,0:T(1,128)}', space=vmem, size = 0x200, scoped, tag = 'scratch operand']
  %s0 = inlined_call_operand.vmem [shape: f32[16,32], index: 0, kind: input, shape index: {}]
  %s1 = inlined_call_operand.vmem [shape: s32[16,1], index: 1, kind: input, shape index: {}]
  %s2 = inlined_call_operand.hbm [shape: f32[16,128], index: 2, kind: output, shape index: {}]
  %s3 = sld [smem:[#allocation0]]
  $region49: #{tpu_custom_call.1} parent=0
    _
  %s5 = ssub.s32 1, %s3
  %s6 = scalar_select 0, %s5, %s3
  $region1: #{tpu_custom_call.1} parent=0
    #allocation3 [shape = 'u8[8192]{0}', space=vmem, size = 0x2000, scoped, tag = 'output window, operand 0']
    #allocation4 [shape = 's32[2]{0}', space=sflag, size = 0x8, scoped, tag = 'scoped memory for tpu_custom_call.1']
    %7 = vsyncpa [#allocation4], 0
    %s8 = scalar_lea.sflag [#allocation4], 1
    %9 = vsyncpa %s8, 0
    loop: start=0, step=1, limit=4
    $region2: #{tpu_custom_call.1} parent=1 // loop_pre_header
      _
    $region3: #{tpu_custom_call.1} parent=1 // loop_header
      %s11 = sphi 0, %s15
      %p12 = scmp.ge.s32.totalorder %s11, 4
      %s18 = sphi 0, %s30
      %s19 = sphi 0, %s26
      %s20 = sphi 0, %s18
      %s21 = sphi 0, %s19
      %s22 = sphi 0, %s20
      %s23 = sphi 0, %s21
      %s35 = sphi 0, %s37
      %s38 = sphi 0, %s35
      %s39 = sphi 0, %s38
      %s55 = sphi 0, %s39
      %s63 = sphi 0, %s65
      %s66 = sphi 0, %s63
      %s67 = sphi 0, %s66
      %s83 = sphi 0, %s67
      %s89 = sphi 0, %s91
      %s92 = sphi 0, %s89
      %s93 = sphi 0, %s92
      %s109 = sphi 0, %s93
    $region4: #{tpu_custom_call.1} parent=1 // loop_header_branch
      %14 = sbr.rel (%p12) target = $region8
    $region5: #{tpu_custom_call.1} parent=1 // loop_body
      %s16 = ssub.s32 %s11, 1
      %s17 = ssub.s32 %s11, 2
      %s24 = sadd.s32 1, %s19
      %p25 = scmp.ge.s32.totalorder %s24, 1
      %s26 = scalar_select %p25, 0, %s24
      %s27 = sadd.s32 1, %s18
      %s28 = scalar_select %p25, %s27, %s18
      %p29 = scmp.ge.s32.totalorder %s28, 2
      %s30 = scalar_select %p29, 0, %s28
      %s31 = sadd.s32 %s18, %s19
      %s32 = sadd.s32 %s30, %s26
      %s33 = ssub.s32 %s31, %s32
      %p34 = scmp.eq.s32.totalorder %s33, 0
      %s36 = sadd.s32 %s35, 1
      %s37 = scalar_select %p34, %s35, %s36
      %p40 = pneg %p34
      %p41 = scmp.eq.s32.totalorder %s11, 1
      %p42 = por %p40, %p41
      %p43 = scmp.ne.s32.totalorder %s35, %s38
      %p44 = scmp.eq.s32.totalorder %s11, 0
      %p45 = por %p43, %p44
      %p46 = scmp.ne.s32.totalorder %s35, %s38
      %p47 = scmp.eq.s32.totalorder %s16, 1
      %p48 = por %p46, %p47
      %p49 = scmp.ne.s32.totalorder %s38, %s39
      %p50 = scmp.eq.s32.totalorder %s16, 0
      %p51 = por %p49, %p50
      %p52 = scmp.ne.s32.totalorder %s38, %s39
      %p53 = scmp.eq.s32.totalorder %s17, 1
      %p54 = por %p52, %p53
      %p56 = scmp.ne.s32.totalorder %s39, %s55
      %p57 = scmp.eq.s32.totalorder %s17, 0
      %p58 = por %p56, %p57
      %s59 = sadd.s32 %s18, %s19
      %s60 = sadd.s32 %s30, %s26
      %s61 = ssub.s32 %s59, %s60
      %p62 = scmp.eq.s32.totalorder %s61, 0
      %s64 = sadd.s32 %s63, 1
      %s65 = scalar_select %p62, %s63, %s64
      %p68 = pneg %p62
      %p69 = scmp.eq.s32.totalorder %s11, 1
      %p70 = por %p68, %p69
      %p71 = scmp.ne.s32.totalorder %s63, %s66
      %p72 = scmp.eq.s32.totalorder %s11, 0
      %p73 = por %p71, %p72
      %p74 = scmp.ne.s32.totalorder %s63, %s66
      %p75 = scmp.eq.s32.totalorder %s16, 1
      %p76 = por %p74, %p75
      %p77 = scmp.ne.s32.totalorder %s66, %s67
      %p78 = scmp.eq.s32.totalorder %s16, 0
      %p79 = por %p77, %p78
      %p80 = scmp.ne.s32.totalorder %s66, %s67
      %p81 = scmp.eq.s32.totalorder %s17, 1
      %p82 = por %p80, %p81
      %p84 = scmp.ne.s32.totalorder %s67, %s83
      %p85 = scmp.eq.s32.totalorder %s17, 0
      %p86 = por %p84, %p85
      %s87 = ssub.s32 %s18, %s30
      %p88 = scmp.eq.s32.totalorder %s87, 0
      %s90 = sadd.s32 %s89, 1
      %s91 = scalar_select %p88, %s89, %s90
      %p94 = pneg %p88
      %p95 = scmp.eq.s32.totalorder %s11, 1
      %p96 = por %p94, %p95
      %p97 = scmp.ne.s32.totalorder %s89, %s92
      %p98 = scmp.eq.s32.totalorder %s11, 0
      %p99 = por %p97, %p98
      %p100 = scmp.ne.s32.totalorder %s89, %s92
      %p101 = scmp.eq.s32.totalorder %s16, 1
      %p102 = por %p100, %p101
      %p103 = scmp.ne.s32.totalorder %s92, %s93
      %p104 = scmp.eq.s32.totalorder %s16, 0
      %p105 = por %p103, %p104
      %p106 = scmp.ne.s32.totalorder %s92, %s93
      %p107 = scmp.eq.s32.totalorder %s17, 1
      %p108 = por %p106, %p107
      %p110 = scmp.ne.s32.totalorder %s93, %s109
      %p111 = scmp.eq.s32.totalorder %s17, 0
      %p112 = por %p110, %p111
      %p113 = scmp.le.s32.totalorder 1, %s11
      %p114 = scmp.lt.s32.totalorder %s11, 3
      %p115 = pnand %p113, %p114
      %p116 = pneg %p115
      // Predicated region
      $region9: #{tpu_custom_call.1} parent=5 // pred_check
        _
      $region10: #{tpu_custom_call.1} parent=5 // pred_check_branch
        %118 = sbr.rel (%p115) target = $region12
      $region11: #{tpu_custom_call.1} parent=5 // pred_region
        %s119 = ssub.s32 %s11, 1
      $region12: #{tpu_custom_call.1} parent=5 // pred_fallthru
        _
      %p120 = scmp.lt.s32.totalorder %s11, 2
      // Predicated region
      $region13: #{tpu_custom_call.1} parent=5 // pred_check
        %p121 = pneg %p120
      $region14: #{tpu_custom_call.1} parent=5 // pred_check_branch
        %123 = sbr.rel (%p121) target = $region16
      $region15: #{tpu_custom_call.1} parent=5 // pred_region
        // Predicated region
        $region17: #{tpu_custom_call.1} parent=15 // pred_check
          %p124 = pneg %p45
        $region18: #{tpu_custom_call.1} parent=15 // pred_check_branch
          %126 = sbr.rel (%p124) target = $region20
        $region19: #{tpu_custom_call.1} parent=15 // pred_region
          %s127 = sadd.s32 %s18, %s19
          %p128 = scmp.lt.s32.totalorder %s127, 1
          %s129 = scalar_select %p128, %s127, 1
          %s130 = smul.addr %s129, 8
          %s131 = scalar_lea.vmem %s0, %s130
          %s132 = sadd.s32 %s18, %s19
        $region20: #{tpu_custom_call.1} parent=15 // pred_fallthru
          _
        // Predicated region
        $region21: #{tpu_custom_call.1} parent=15 // pred_check
          %p133 = pneg %p73
        $region22: #{tpu_custom_call.1} parent=15 // pred_check_branch
          %135 = sbr.rel (%p133) target = $region24
        $region23: #{tpu_custom_call.1} parent=15 // pred_region
          %s136 = sadd.s32 %s18, %s19
          %p137 = scmp.lt.s32.totalorder %s136, 1
          %s138 = scalar_select %p137, %s136, 1
          %s139 = smul.addr %s138, 8
          %s140 = scalar_lea.vmem %s1, %s139
          %s141 = sadd.s32 %s18, %s19
        $region24: #{tpu_custom_call.1} parent=15 // pred_fallthru
          _
      $region16: #{tpu_custom_call.1} parent=5 // pred_fallthru
        _
      %p142 = scmp.le.s32.totalorder 1, %s11
      %p143 = scmp.lt.s32.totalorder %s11, 3
      %p144 = pnand %p142, %p143
      %p145 = pneg %p144
      // Predicated region
      $region25: #{tpu_custom_call.1} parent=5 // pred_check
        _
      $region26: #{tpu_custom_call.1} parent=5 // pred_check_branch
        %147 = sbr.rel (%p144) target = $region28
      $region27: #{tpu_custom_call.1} parent=5 // pred_region
        %s148 = ssub.s32 %s11, 1
        %s149 = sadd.s32 %s20, %s21
        %p150 = scmp.lt.s32.totalorder %s149, 1
        %s151 = scalar_select %p150, %s149, 1
        %s152 = smul.addr %s151, 8
        %s153 = scalar_lea.vmem %s0, %s152
        %p154 = pneg %p51
        %p155 = pneg %p48
        %s156 = sadd.s32 %s20, %s21
        %p157 = scmp.lt.s32.totalorder %s156, 1
        %s158 = scalar_select %p157, %s156, 1
        %s159 = smul.addr %s158, 8
        %s160 = scalar_lea.vmem %s1, %s159
        %p161 = pneg %p79
        %p162 = pneg %p76
        %p163 = pneg %p105
        %p164 = pneg %p102
        %s165 = sand.u32 %s92, 1
        %s166 = scalar_lea.sflag [#allocation4], %s165
        %s167 = sand.u32 %s92, 1
        %s168 = smul.addr %s167, 8
        %s169 = scalar_lea.vmem [#allocation3], %s168
        %s170 = sadd.s32 %s20, %s21
        %p171 = scmp.lt.s32.totalorder %s170, 1
        %s172 = scalar_select %p171, %s170, 1
        %s173 = smul.addr %s172, 8
        %s174 = scalar_lea.vmem %s0, %s173
        %s175 = sadd.s32 %s20, %s21
        %s176 = sadd.s32 %s20, %s21
        %p177 = scmp.lt.s32.totalorder %s176, 1
        %s178 = scalar_select %p177, %s176, 1
        %s179 = smul.addr %s178, 8
        %s180 = scalar_lea.vmem %s1, %s179
        %s181 = sadd.s32 %s20, %s21
        %p182 = scmp.eq.s32.totalorder %s21, 0
        // Predicated region
        $region29: #{tpu_custom_call.1} parent=27 // pred_check
          %p183 = pneg %p182
        $region30: #{tpu_custom_call.1} parent=27 // pred_check_branch
          %185 = sbr.rel (%p183) target = $region32
        $region31: #{tpu_custom_call.1} parent=27 // pred_region
          %vm186 = vcmask 0
          %187 = vst.msk [vmem:[#allocation2] sm:$0x1] %vm186, 0.0
        $region32: #{tpu_custom_call.1} parent=27 // pred_fallthru
          _
        %v188 = vld [vmem:[%s174] sm:$0xff]
        %vm189 = vcmask 261120
        %v190 = vsel %vm189, %v188, -inf
        %191 = vmax.xlane.f32.xlu0 %v190
        %v192 = vpop.xlane.xlu0 %191
        %v193 = vsub.f32 %v188, %v192
        %v194 = vmul.f32 %v193, 1.442695
        %v195 = vpow.pop %v194
        %v196 = vsel %vm189, %v195, 0.0
        %197 = vadd.xlane.f32.xlu0 %v196
        %v198 = vpop.xlane.xlu0 %197
        %v199 = vld [vmem:[%s180] sm:$0xff]
        %v200 = vlaneseq
        %v201 = vand.u32 %v200, 127
        %202 = vset.pattern.permute.xlu0 0
        %203 = vperm.xlu0 %202, %v199
        %v204 = vpop.permute.xlu0 %203
        %vm205 = vcmp.eq.s32.totalorder %v201, %v204
        %v206 = vsel %vm205, 1, 0
        %v207 = vcvt.s32.f32 %v206
        %v208 = vmul.f32 %v193, %v207
        %v209 = vsel %vm189, %v208, 0.0
        %210 = vadd.xlane.f32.xlu0 %v209
        %v211 = vpop.xlane.xlu0 %210
        %v212 = vmul.f32 %v195, %v207
        %v213 = vsel %vm189, %v212, 0.0
        %214 = vadd.xlane.f32.xlu0 %v213
        %v215 = vpop.xlane.xlu0 %214
        %v216 = vlog2.pop %v198
        %v217 = vmul.f32 %v216, 0.6931472
        %v218 = vsub.f32 %v211, %v217
        %v219 = vmin.f32 %v218, 0.0
        %v220 = vsub.f32 0.0, %v219
        %v221 = vrcp.pop %v198
        %v222 = vmul.f32 %v215, %v221
        %v223 = vsub.f32 1.0, %v222
        %v224 = vmax.f32 %v223, 0.0
        %v225 = vmul.f32 %v224, %v224
        %v226 = vmul.f32 %v225, 0.5
        %v227 = vmul.f32 %v226, %v220
        %s228 = sadd.s32 %s20, %s21
        %s229 = smul.u32 %s228, 8
        %v230 = vlaneseq
        %v231 = vshrl.u32 %v230, 7
        %v232 = vstv %s229
        %v233 = vadd.s32 %v232, %v231
        %vm234 = vcmp.lt.s32.totalorder %v233, 8
        %v235 = vsel %vm234, 1, 0
        %v236 = vcvt.s32.f32 %v235
        %v237 = vld [vmem:[#allocation2] sm:$0x1]
        %v238 = vmul.f32 %v227, %v236
        %vm239 = vcmask 7168
        %v240 = vsel %vm239, %v238, 0.0
        %241 = vadd.xlane.f32.xlu0 %v240
        %v242 = vpop.xlane.xlu0 %241
        %v243 = vrot.slane %v242, 4
        %v244 = vadd.f32 %v242, %v243
        %v245 = vrot.slane %v244, 2
        %v246 = vadd.f32 %v244, %v245
        %v247 = vrot.slane %v246, 1
        %v248 = vadd.f32 %v246, %v247
        %s249 = vtos %v248
        %v250 = vstv %s249
        %v251 = vadd.f32 %v237, %v250
        %vm252 = vcmask 0
        %253 = vst.msk [vmem:[#allocation2] sm:$0x1] %vm252, %v251
        // Predicated region
        $region33: #{tpu_custom_call.1} parent=27 // pred_check
          %p254 = pneg %p182
        $region34: #{tpu_custom_call.1} parent=27 // pred_check_branch
          %256 = sbr.rel (%p254) target = $region36
        $region35: #{tpu_custom_call.1} parent=27 // pred_region
          %v257 = vld [vmem:[#allocation2] sm:$0x1]
          %v259 = vlaneseq
          %v260 = vshrl.u32 %v259, 7
          %v261 = vsub.s32 0, %v260
          %v262 = vrot.slane %v257, %v261
          %263 = vset.pattern.permute.xlu0 0
          %264 = vperm.xlu0 %263, %v262
          %v265 = vpop.permute.xlu0 %264
          %267 = vst [vmem:[%s169] sm:$0xff] %v265
        $region36: #{tpu_custom_call.1} parent=27 // pred_fallthru
          _
        %s268 = sand.u32 %s92, 1
        %s269 = scalar_lea.sflag [#allocation4], %s268
        %s270 = sand.u32 %s92, 1
        %s271 = smul.addr %s270, 8
        %s272 = scalar_lea.vmem [#allocation3], %s271
        // Predicated region
        $region37: #{tpu_custom_call.1} parent=27 // pred_check
          %p273 = pneg %p102
        $region38: #{tpu_custom_call.1} parent=27 // pred_check_branch
          %275 = sbr.rel (%p273) target = $region40
        $region39: #{tpu_custom_call.1} parent=27 // pred_region
          %s277 = ssub.s32 128, 128
          %278 = vsyncadd %s269, %s277
          %s279 = smul.addr %s20, 128
          %s280 = scalar_lea.hbm %s2, %s279
          %s282 = sshll.u32 %s272, 4
          %s283 = int_to_ptr.vmem [resolvable:$true] %s282
          %285 = dma.vmem_to_hbm [thread:$0]  %s283, 128, %s280, %s269
        $region40: #{tpu_custom_call.1} parent=27 // pred_fallthru
          _
      $region28: #{tpu_custom_call.1} parent=5 // pred_fallthru
        _
      %p286 = scmp.le.s32.totalorder 2, %s11
      // Predicated region
      $region41: #{tpu_custom_call.1} parent=5 // pred_check
        %p287 = pneg %p286
      $region42: #{tpu_custom_call.1} parent=5 // pred_check_branch
        %289 = sbr.rel (%p287) target = $region44
      $region43: #{tpu_custom_call.1} parent=5 // pred_region
        %s290 = ssub.s32 %s11, 2
        // Predicated region
        $region45: #{tpu_custom_call.1} parent=43 // pred_check
          %p291 = pneg %p108
        $region46: #{tpu_custom_call.1} parent=43 // pred_check_branch
          %293 = sbr.rel (%p291) target = $region48
        $region47: #{tpu_custom_call.1} parent=43 // pred_region
          %s294 = sand.u32 %s93, 1
          %s295 = scalar_lea.sflag [#allocation4], %s294
          %s296 = sand.u32 %s93, 1
          %s297 = smul.addr %s296, 8
          %s298 = scalar_lea.vmem [#allocation3], %s297
          %299 = dma.done %s295, 128
        $region48: #{tpu_custom_call.1} parent=43 // pred_fallthru
          _
      $region44: #{tpu_custom_call.1} parent=5 // pred_fallthru
        _
    $region6: #{tpu_custom_call.1} parent=1 // loop_footer
      %s15 = sadd.s32 1, %s11
    $region7: #{tpu_custom_call.1} parent=1 // loop_footer_branch
      %10 = sbr.rel target = $region3
    $region8: #{tpu_custom_call.1} parent=1 // loop_exit
      _
    %300 = vsyncpa [#allocation4], 1
    %s301 = scalar_lea.sflag [#allocation4], 1
    %302 = vsyncpa %s301, 1

</llo_original>
